<compile_context>
chip_gen: v6e
topology: v6e:2x2x1
jax: 0.10.0
libtpu: 0.0.40
codegen_flags: <defaults>
</compile_context>

<pallas_src>
import math
import functools

import jax
import jax.numpy as jnp
from jax.experimental import pallas as pl
from jax.experimental.pallas import tpu as pltpu


# ----------------------------- Pallas kernel ------------------------------- #

def _attention_kernel(x_ref, wq_ref, bq_ref, wk_ref, bk_ref, wv_ref, bv_ref,
                      wo_ref, bo_ref, pos_ref, mask_ref, o_ref, acc_ref,
                      *, inv_scale):
    """One (batch, head) pair per grid step.

    x_ref    : (1, S, D)       hidden states for this batch element
    wq/wk/wv : (1, D, d_kv)    per-head projection slices (in, out) layout
    bq/bk/bv : (1, 1, d_kv)    per-head projection biases
    wo_ref   : (1, d_kv, D)    per-head slice of the output projection
    bo_ref   : (1, D)          output projection bias (added once, last head)
    pos_ref  : (1, 1, S, S)    relative-position bias for this head (pre-scaled)
    mask_ref : (1, 1, S, S)    user mask for this batch element (pre-scaled)
    o_ref    : (1, S, D)       attention output (written on the last head)
    acc_ref  : (S, D) f32      VMEM accumulator, resident across the head axis
    """
    h = pl.program_id(1)
    last_h = pl.num_programs(1) - 1

    x = x_ref[0]                                              # (S, D)

    q = jnp.dot(x, wq_ref[0], preferred_element_type=jnp.float32) + bq_ref[0]
    k = jnp.dot(x, wk_ref[0], preferred_element_type=jnp.float32) + bk_ref[0]
    v = jnp.dot(x, wv_ref[0], preferred_element_type=jnp.float32) + bv_ref[0]

    # Fold the module's 1/d_kv**2 score scaling into q (S*d_kv multiply instead
    # of an S*S multiply on the scores).  The bias inputs are pre-scaled by the
    # same factor in the wrapper, so softmax((qk + bias)/d_kv**2) is preserved.
    q = q * inv_scale

    # QK^T without materializing k.T: contract dim 1 of both operands.
    scores = jax.lax.dot_general(
        q, k, dimension_numbers=(((1,), (1,)), ((), ())),
        preferred_element_type=jnp.float32)                   # (S, S)

    scores = scores + pos_ref[0, 0] + mask_ref[0, 0]

    # numerically-stable softmax in f32; reciprocal goes to the EUP slot.
    scores = scores - jnp.max(scores, axis=-1, keepdims=True)
    e = jnp.exp(scores)
    p = e * pl.reciprocal(jnp.sum(e, axis=-1, keepdims=True), approx=True)

    ctx = jnp.dot(p.astype(v.dtype), v,
                  preferred_element_type=jnp.float32)         # (S, d_kv)

    @pl.when(h == 0)
    def _():
        acc_ref[...] = jnp.zeros_like(acc_ref)

    # per-head contribution through the output projection, summed over heads
    acc_ref[...] += jnp.dot(ctx, wo_ref[0], preferred_element_type=jnp.float32)

    @pl.when(h == last_h)
    def _():
        o_ref[0] = (acc_ref[...] + bo_ref[...]).astype(o_ref.dtype)


def attention_pallas(hidden_states, params, position_bias, mask, *,
                     num_heads, d_kv):
    """hidden_states: (B, S, D); position_bias: (1, H, S, S); mask: (B, 1, S, S)."""
    B, S, D = hidden_states.shape
    H = num_heads
    inv_scale = 1.0 / float(d_kv ** 2)

    # One-time layout plumbing: per-head weight / bias slices so each (b, h)
    # grid step only DMAs the slice it needs.
    def per_head_w(w):                       # (D, D) -> (H, D, d_kv)
        return w.reshape(D, H, d_kv).transpose(1, 0, 2)

    def per_head_b(b):                       # (1, D) -> (H, 1, d_kv)
        return b.reshape(H, d_kv)[:, None, :]

    wq_h, bq_h = per_head_w(params["wq"]), per_head_b(params["bq"])
    wk_h, bk_h = per_head_w(params["wk"]), per_head_b(params["bk"])
    wv_h, bv_h = per_head_w(params["wv"]), per_head_b(params["bv"])
    wo_h = params["wo"].reshape(H, d_kv, D)  # (in, out) -> (H, d_kv, D)
    bo = params["bo"]                        # (1, D)

    # Pre-scale the de-duplicated bias inputs once (the kernel folds the
    # 1/d_kv**2 score scaling into q, so the additive bias carries it too).
    pos = (position_bias * inv_scale).astype(jnp.float32)     # (1, H, S, S)
    msk = (mask * inv_scale).astype(jnp.float32)              # (B, 1, S, S)

    kernel = functools.partial(_attention_kernel, inv_scale=inv_scale)

    return pl.pallas_call(
        kernel,
        out_shape=jax.ShapeDtypeStruct((B, S, D), hidden_states.dtype),
        grid_spec=pltpu.PrefetchScalarGridSpec(
            num_scalar_prefetch=0,
            grid=(B, H),
            in_specs=[
                pl.BlockSpec((1, S, D), lambda b, h: (b, 0, 0)),       # x
                pl.BlockSpec((1, D, d_kv), lambda b, h: (h, 0, 0)),    # wq slice
                pl.BlockSpec((1, 1, d_kv), lambda b, h: (h, 0, 0)),    # bq slice
                pl.BlockSpec((1, D, d_kv), lambda b, h: (h, 0, 0)),    # wk slice
                pl.BlockSpec((1, 1, d_kv), lambda b, h: (h, 0, 0)),    # bk slice
                pl.BlockSpec((1, D, d_kv), lambda b, h: (h, 0, 0)),    # wv slice
                pl.BlockSpec((1, 1, d_kv), lambda b, h: (h, 0, 0)),    # bv slice
                pl.BlockSpec((1, d_kv, D), lambda b, h: (h, 0, 0)),    # wo slice
                pl.BlockSpec((1, D), lambda b, h: (0, 0)),             # bo
                pl.BlockSpec((1, 1, S, S), lambda b, h: (0, h, 0, 0)),  # pos bias
                pl.BlockSpec((1, 1, S, S), lambda b, h: (b, 0, 0, 0)),  # mask
            ],
            out_specs=pl.BlockSpec((1, S, D), lambda b, h: (b, 0, 0)),
            scratch_shapes=[pltpu.VMEM((S, D), jnp.float32)],
        ),
        compiler_params=pltpu.CompilerParams(
            dimension_semantics=("parallel", "arbitrary"),
            vmem_limit_bytes=32 * 1024 * 1024,
        ),
    )(
        hidden_states,
        wq_h, bq_h, wk_h, bk_h, wv_h, bv_h,
        wo_h, bo,
        pos, msk,
    )


# --------------------------- plain-JAX glue -------------------------------- #

def relative_position_bucket(query_length, bidirectional=True,
                             num_buckets=32, max_distance=128):
    """Mirror of Attention._relative_position_bucket (plain JAX glue)."""
    context_position = jnp.arange(query_length, dtype=jnp.int32)[:, None]
    memory_position = jnp.arange(query_length, dtype=jnp.int32)[None, :]
    relative_position = memory_position - context_position
    relative_buckets = jnp.zeros_like(relative_position)
    if bidirectional:
        num_buckets //= 2
        relative_buckets = relative_buckets + \
            (relative_position > 0).astype(jnp.int32) * num_buckets
        relative_position = jnp.abs(relative_position)
    else:
        relative_position = -jnp.minimum(relative_position,
                                         jnp.zeros_like(relative_position))
    max_exact = num_buckets // 2
    is_small = relative_position < max_exact
    rel_if_large = max_exact + (
        jnp.log(relative_position.astype(jnp.float32) / max_exact)
        / math.log(max_distance / max_exact) * (num_buckets - max_exact)
    ).astype(jnp.int32)
    rel_if_large = jnp.minimum(rel_if_large, num_buckets - 1)
    relative_buckets = relative_buckets + jnp.where(is_small, relative_position,
                                                    rel_if_large)
    return relative_buckets


def attention_forward(hidden_states, params, attention_masks, *, num_heads,
                      d_kv, has_relative_attention_bias,
                      relative_attention_num_buckets=32):
    """Full forward matching the PyTorch module; returns (output, attention_masks)."""
    B, S, D = hidden_states.shape
    H = num_heads

    if has_relative_attention_bias:
        buckets = relative_position_bucket(
            S, num_buckets=relative_attention_num_buckets)            # (S, S)
        # embedding lookup: (S, S, H) -> (1, H, S, S)
        position_bias = jnp.transpose(params["rel_emb"][buckets], (2, 0, 1))[None]
        # module semantics: the returned mask is position_bias + original mask
        returned_masks = position_bias + attention_masks \
            if attention_masks is not None else position_bias
    else:
        position_bias = jnp.zeros((1, H, S, S), dtype=jnp.float32)
        returned_masks = attention_masks

    if attention_masks is not None:
        mask = jnp.broadcast_to(attention_masks, (B, 1, S, S)).astype(jnp.float32)
    else:
        mask = jnp.zeros((B, 1, S, S), dtype=jnp.float32)

    out = attention_pallas(hidden_states, params,
                           position_bias.astype(jnp.float32), mask,
                           num_heads=num_heads, d_kv=d_kv)
    return out, returned_masks


# pure-JAX reference for a correctness check
def attention_reference(hidden_states, params, attention_bias, *, num_heads, d_kv):
    B, S, D = hidden_states.shape
    q = hidden_states @ params["wq"] + params["bq"][0]
    k = hidden_states @ params["wk"] + params["bk"][0]
    v = hidden_states @ params["wv"] + params["bv"][0]
    shp = lambda t: t.reshape(B, S, num_heads, d_kv).transpose(0, 2, 1, 3)
    q, k, v = shp(q), shp(k), shp(v)
    scores = jnp.einsum("bhqd,bhkd->bhqk", q, k) + attention_bias
    w = jax.nn.softmax(scores / float(d_kv ** 2), axis=-1)
    ctx = jnp.einsum("bhqk,bhkd->bhqd", w, v)
    ctx = ctx.transpose(0, 2, 1, 3).reshape(B, S, D)
    return ctx @ params["wo"] + params["bo"][0]


# --------------------------------- main ------------------------------------ #

if __name__ == "__main__":
    # small config
    B, S = 2, 8
    d_model, num_heads = 32, 4
    d_kv = d_model // num_heads
    num_buckets = 32

    key = jax.random.PRNGKey(0)
    ks = jax.random.split(key, 12)

    def linear_params(kw, kb, fan_in, fan_out):
        # nn.Linear default init (uniform +/- 1/sqrt(fan_in)); weight stored (in, out)
        bound = 1.0 / math.sqrt(fan_in)
        w = jax.random.uniform(kw, (fan_in, fan_out), jnp.float32, -bound, bound)
        b = jax.random.uniform(kb, (1, fan_out), jnp.float32, -bound, bound)
        return w, b

    wq, bq = linear_params(ks[0], ks[1], d_model, d_model)
    wk, bk = linear_params(ks[2], ks[3], d_model, d_model)
    wv, bv = linear_params(ks[4], ks[5], d_model, d_model)
    wo, bo = linear_params(ks[6], ks[7], d_model, d_model)
    rel_emb = jax.random.normal(ks[8], (num_buckets, num_heads), jnp.float32)

    params = dict(wq=wq, bq=bq, wk=wk, bk=bk, wv=wv, bv=bv, wo=wo, bo=bo,
                  rel_emb=rel_emb)

    hidden_states = jax.random.normal(ks[9], (B, S, d_model), jnp.float32)
    attention_masks = 0.1 * jax.random.normal(ks[10], (B, 1, S, S), jnp.float32)

    out, returned_mask = attention_forward(
        hidden_states, params, attention_masks,
        num_heads=num_heads, d_kv=d_kv,
        has_relative_attention_bias=True,
        relative_attention_num_buckets=num_buckets)
    out = jax.block_until_ready(out)

    # sanity check vs plain-JAX reference (tolerance covers the EUP approx
    # reciprocal in the kernel softmax and the scale-folding reordering)
    full_bias = jnp.broadcast_to(returned_mask, (B, num_heads, S, S))
    ref = attention_reference(hidden_states, params, full_bias,
                              num_heads=num_heads, d_kv=d_kv)
    assert out.shape == (B, S, d_model)
    max_err = float(jnp.max(jnp.abs(out - ref)))
    assert jnp.allclose(out, ref, atol=5e-3, rtol=5e-3), max_err

    print("KERNEL_OK")
</pallas_src>

<mosaic_0001>
module attributes {stable_mosaic.version = 11 : i64} {
  func.func @_attention_kernel(%arg0: i32, %arg1: i32, %arg2: memref<1x8x32xf32, #tpu.memory_space<vmem>>, %arg3: memref<1x32x8xf32, #tpu.memory_space<vmem>>, %arg4: memref<1x1x8xf32, #tpu.memory_space<vmem>>, %arg5: memref<1x32x8xf32, #tpu.memory_space<vmem>>, %arg6: memref<1x1x8xf32, #tpu.memory_space<vmem>>, %arg7: memref<1x32x8xf32, #tpu.memory_space<vmem>>, %arg8: memref<1x1x8xf32, #tpu.memory_space<vmem>>, %arg9: memref<1x8x32xf32, #tpu.memory_space<vmem>>, %arg10: memref<1x32xf32, #tpu.memory_space<vmem>>, %arg11: memref<1x1x8x8xf32, #tpu.memory_space<vmem>>, %arg12: memref<1x1x8x8xf32, #tpu.memory_space<vmem>>, %arg13: memref<1x8x32xf32, #tpu.memory_space<vmem>>, %arg14: memref<8x32xf32, #tpu.memory_space<vmem>>) attributes {dimension_semantics = [#tpu.dimension_semantics<parallel>, #tpu.dimension_semantics<arbitrary>], iteration_bounds = array<i64: 2, 4>, scalar_prefetch = 0 : i64, scratch_operands = 1 : i64, tpu.core_type = #tpu.core_type<tc>, window_params = [{transform_indices = @transform_0, window_bounds = array<i64: 1, 8, 32>}, {transform_indices = @transform_1, window_bounds = array<i64: 1, 32, 8>}, {transform_indices = @transform_2, window_bounds = array<i64: 1, 1, 8>}, {transform_indices = @transform_3, window_bounds = array<i64: 1, 32, 8>}, {transform_indices = @transform_4, window_bounds = array<i64: 1, 1, 8>}, {transform_indices = @transform_5, window_bounds = array<i64: 1, 32, 8>}, {transform_indices = @transform_6, window_bounds = array<i64: 1, 1, 8>}, {transform_indices = @transform_7, window_bounds = array<i64: 1, 8, 32>}, {pipeline_mode = #tpu.pipeline_mode<synchronous>, transform_indices = @transform_8, window_bounds = array<i64: 1, 32>}, {transform_indices = @transform_9, window_bounds = array<i64: 1, 1, 8, 8>}, {transform_indices = @transform_10, window_bounds = array<i64: 1, 1, 8, 8>}, {transform_indices = @transform_11, window_bounds = array<i64: 1, 8, 32>}]} {
    %c0 = arith.constant 0 : index
    %c0_0 = arith.constant 0 : index
    %c0_1 = arith.constant 0 : index
    %0 = vector.load %arg2[%c0, %c0_0, %c0_1] : memref<1x8x32xf32, #tpu.memory_space<vmem>>, vector<1x8x32xf32>
    %1 = vector.shape_cast %0 : vector<1x8x32xf32> to vector<8x32xf32>
    %c0_2 = arith.constant 0 : index
    %c0_3 = arith.constant 0 : index
    %c0_4 = arith.constant 0 : index
    %2 = vector.load %arg3[%c0_2, %c0_3, %c0_4] : memref<1x32x8xf32, #tpu.memory_space<vmem>>, vector<1x32x8xf32>
    %3 = vector.shape_cast %2 : vector<1x32x8xf32> to vector<32x8xf32>
    %cst = arith.constant dense<0.000000e+00> : vector<8x8xf32>
    %4 = tpu.matmul %1, %3, %cst {dimension_numbers = #tpu.dot_dimension_numbers<[1], [0], [0], [1], [0, 0, 1, 1], [], []>} : vector<8x32xf32>, vector<32x8xf32>, vector<8x8xf32> -> vector<8x8xf32>
    %c0_5 = arith.constant 0 : index
    %c0_6 = arith.constant 0 : index
    %c0_7 = arith.constant 0 : index
    %5 = vector.load %arg4[%c0_5, %c0_6, %c0_7] : memref<1x1x8xf32, #tpu.memory_space<vmem>>, vector<1x1x8xf32>
    %6 = vector.shape_cast %5 : vector<1x1x8xf32> to vector<1x8xf32>
    %7 = vector.broadcast %6 : vector<1x8xf32> to vector<8x8xf32>
    %8 = arith.addf %4, %7 : vector<8x8xf32>
    %c0_8 = arith.constant 0 : index
    %c0_9 = arith.constant 0 : index
    %c0_10 = arith.constant 0 : index
    %9 = vector.load %arg5[%c0_8, %c0_9, %c0_10] : memref<1x32x8xf32, #tpu.memory_space<vmem>>, vector<1x32x8xf32>
    %10 = vector.shape_cast %9 : vector<1x32x8xf32> to vector<32x8xf32>
    %cst_11 = arith.constant dense<0.000000e+00> : vector<8x8xf32>
    %11 = tpu.matmul %1, %10, %cst_11 {dimension_numbers = #tpu.dot_dimension_numbers<[1], [0], [0], [1], [0, 0, 1, 1], [], []>} : vector<8x32xf32>, vector<32x8xf32>, vector<8x8xf32> -> vector<8x8xf32>
    %c0_12 = arith.constant 0 : index
    %c0_13 = arith.constant 0 : index
    %c0_14 = arith.constant 0 : index
    %12 = vector.load %arg6[%c0_12, %c0_13, %c0_14] : memref<1x1x8xf32, #tpu.memory_space<vmem>>, vector<1x1x8xf32>
    %13 = vector.shape_cast %12 : vector<1x1x8xf32> to vector<1x8xf32>
    %14 = vector.broadcast %13 : vector<1x8xf32> to vector<8x8xf32>
    %15 = arith.addf %11, %14 : vector<8x8xf32>
    %c0_15 = arith.constant 0 : index
    %c0_16 = arith.constant 0 : index
    %c0_17 = arith.constant 0 : index
    %16 = vector.load %arg7[%c0_15, %c0_16, %c0_17] : memref<1x32x8xf32, #tpu.memory_space<vmem>>, vector<1x32x8xf32>
    %17 = vector.shape_cast %16 : vector<1x32x8xf32> to vector<32x8xf32>
    %cst_18 = arith.constant dense<0.000000e+00> : vector<8x8xf32>
    %18 = tpu.matmul %1, %17, %cst_18 {dimension_numbers = #tpu.dot_dimension_numbers<[1], [0], [0], [1], [0, 0, 1, 1], [], []>} : vector<8x32xf32>, vector<32x8xf32>, vector<8x8xf32> -> vector<8x8xf32>
    %c0_19 = arith.constant 0 : index
    %c0_20 = arith.constant 0 : index
    %c0_21 = arith.constant 0 : index
    %19 = vector.load %arg8[%c0_19, %c0_20, %c0_21] : memref<1x1x8xf32, #tpu.memory_space<vmem>>, vector<1x1x8xf32>
    %20 = vector.shape_cast %19 : vector<1x1x8xf32> to vector<1x8xf32>
    %21 = vector.broadcast %20 : vector<1x8xf32> to vector<8x8xf32>
    %22 = arith.addf %18, %21 : vector<8x8xf32>
    %cst_22 = arith.constant 1.562500e-02 : f32
    %23 = vector.broadcast %cst_22 : f32 to vector<8x8xf32>
    %24 = arith.mulf %8, %23 : vector<8x8xf32>
    %cst_23 = arith.constant dense<0.000000e+00> : vector<8x8xf32>
    %25 = tpu.matmul %24, %15, %cst_23 {dimension_numbers = #tpu.dot_dimension_numbers<[1], [1], [0], [0], [0, 0, 1, 0], [], []>} : vector<8x8xf32>, vector<8x8xf32>, vector<8x8xf32> -> vector<8x8xf32>
    %c0_24 = arith.constant 0 : index
    %c0_25 = arith.constant 0 : index
    %c0_26 = arith.constant 0 : index
    %c0_27 = arith.constant 0 : index
    %26 = vector.load %arg11[%c0_24, %c0_25, %c0_26, %c0_27] : memref<1x1x8x8xf32, #tpu.memory_space<vmem>>, vector<1x1x8x8xf32>
    %27 = vector.shape_cast %26 : vector<1x1x8x8xf32> to vector<8x8xf32>
    %28 = arith.addf %25, %27 : vector<8x8xf32>
    %c0_28 = arith.constant 0 : index
    %c0_29 = arith.constant 0 : index
    %c0_30 = arith.constant 0 : index
    %c0_31 = arith.constant 0 : index
    %29 = vector.load %arg12[%c0_28, %c0_29, %c0_30, %c0_31] : memref<1x1x8x8xf32, #tpu.memory_space<vmem>>, vector<1x1x8x8xf32>
    %30 = vector.shape_cast %29 : vector<1x1x8x8xf32> to vector<8x8xf32>
    %31 = arith.addf %28, %30 : vector<8x8xf32>
    %cst_32 = arith.constant dense<0xFF800000> : vector<8xf32>
    %32 = vector.multi_reduction <maximumf>, %31, %cst_32 [1] : vector<8x8xf32> to vector<8xf32>
    %33 = vector.shape_cast %32 : vector<8xf32> to vector<8x1xf32>
    %34 = vector.broadcast %33 : vector<8x1xf32> to vector<8x8xf32>
    %35 = arith.subf %31, %34 : vector<8x8xf32>
    %36 = math.exp %35 : vector<8x8xf32>
    %cst_33 = arith.constant dense<0.000000e+00> : vector<8xf32>
    %37 = vector.multi_reduction <add>, %36, %cst_33 [1] : vector<8x8xf32> to vector<8xf32>
    %38 = vector.shape_cast %37 : vector<8xf32> to vector<8x1xf32>
    %39 = tpu.reciprocal %38 {approx = true} : vector<8x1xf32> -> vector<8x1xf32>
    %40 = vector.broadcast %39 : vector<8x1xf32> to vector<8x8xf32>
    %41 = arith.mulf %36, %40 : vector<8x8xf32>
    %cst_34 = arith.constant dense<0.000000e+00> : vector<8x8xf32>
    %42 = tpu.matmul %41, %22, %cst_34 {dimension_numbers = #tpu.dot_dimension_numbers<[1], [0], [0], [1], [0, 0, 1, 1], [], []>} : vector<8x8xf32>, vector<8x8xf32>, vector<8x8xf32> -> vector<8x8xf32>
    %c0_i32 = arith.constant 0 : i32
    %43 = arith.cmpi eq, %arg1, %c0_i32 : i32
    %44 = arith.extui %43 : i1 to i32
    %c0_i32_35 = arith.constant 0 : i32
    %45 = arith.cmpi ne, %44, %c0_i32_35 : i32
    scf.if %45 {
      %cst_45 = arith.constant 0.000000e+00 : f32
      %55 = vector.broadcast %cst_45 : f32 to vector<8x32xf32>
      %c0_46 = arith.constant 0 : index
      %c0_47 = arith.constant 0 : index
      %56 = vector.load %arg14[%c0_46, %c0_47] : memref<8x32xf32, #tpu.memory_space<vmem>>, vector<8x32xf32>
      tpu.vector_store %arg14[%c0_46, %c0_47], %55 {strides = array<i32>} : memref<8x32xf32, #tpu.memory_space<vmem>>, vector<8x32xf32>,
    } else {
    }
    %c0_36 = arith.constant 0 : index
    %c0_37 = arith.constant 0 : index
    %46 = vector.load %arg14[%c0_36, %c0_37] : memref<8x32xf32, #tpu.memory_space<vmem>>, vector<8x32xf32>
    %c0_38 = arith.constant 0 : index
    %c0_39 = arith.constant 0 : index
    %c0_40 = arith.constant 0 : index
    %47 = vector.load %arg9[%c0_38, %c0_39, %c0_40] : memref<1x8x32xf32, #tpu.memory_space<vmem>>, vector<1x8x32xf32>
    %48 = vector.shape_cast %47 : vector<1x8x32xf32> to vector<8x32xf32>
    %cst_41 = arith.constant dense<0.000000e+00> : vector<8x32xf32>
    %49 = tpu.matmul %42, %48, %cst_41 {dimension_numbers = #tpu.dot_dimension_numbers<[1], [0], [0], [1], [0, 0, 1, 1], [], []>} : vector<8x8xf32>, vector<8x32xf32>, vector<8x32xf32> -> vector<8x32xf32>
    %50 = arith.addf %46, %49 : vector<8x32xf32>
    %c0_42 = arith.constant 0 : index
    %c0_43 = arith.constant 0 : index
    %51 = vector.load %arg14[%c0_42, %c0_43] : memref<8x32xf32, #tpu.memory_space<vmem>>, vector<8x32xf32>
    tpu.vector_store %arg14[%c0_42, %c0_43], %50 {strides = array<i32>} : memref<8x32xf32, #tpu.memory_space<vmem>>, vector<8x32xf32>,
    %c3_i32 = arith.constant 3 : i32
    %52 = arith.cmpi eq, %arg1, %c3_i32 : i32
    %53 = arith.extui %52 : i1 to i32
    %c0_i32_44 = arith.constant 0 : i32
    %54 = arith.cmpi ne, %53, %c0_i32_44 : i32
    scf.if %54 {
      %c0_45 = arith.constant 0 : index
      %c0_46 = arith.constant 0 : index
      %55 = vector.load %arg14[%c0_45, %c0_46] : memref<8x32xf32, #tpu.memory_space<vmem>>, vector<8x32xf32>
      %c0_47 = arith.constant 0 : index
      %c0_48 = arith.constant 0 : index
      %56 = vector.load %arg10[%c0_47, %c0_48] : memref<1x32xf32, #tpu.memory_space<vmem>>, vector<1x32xf32>
      %57 = vector.broadcast %56 : vector<1x32xf32> to vector<8x32xf32>
      %58 = arith.addf %55, %57 : vector<8x32xf32>
      %c0_49 = arith.constant 0 : index
      %c0_50 = arith.constant 0 : index
      %c0_51 = arith.constant 0 : index
      %59 = vector.load %arg13[%c0_49, %c0_50, %c0_51] : memref<1x8x32xf32, #tpu.memory_space<vmem>>, vector<1x8x32xf32>
      %60 = vector.shape_cast %59 : vector<1x8x32xf32> to vector<8x32xf32>
      %61 = vector.shape_cast %58 : vector<8x32xf32> to vector<1x8x32xf32>
      tpu.vector_store %arg13[%c0_49, %c0_50, %c0_51], %61 {strides = array<i32>} : memref<1x8x32xf32, #tpu.memory_space<vmem>>, vector<1x8x32xf32>,
    } else {
    }
    return
  }
  func.func @transform_0(%arg0: i32, %arg1: i32) -> (i32, i32, i32) {
    %c0_i32 = arith.constant 0 : i32
    %c0_i32_0 = arith.constant 0 : i32
    %c0_i32_1 = arith.constant 0 : i32
    return %arg0, %c0_i32, %c0_i32_0 : i32, i32, i32
  }
  func.func @transform_1(%arg0: i32, %arg1: i32) -> (i32, i32, i32) {
    %c0_i32 = arith.constant 0 : i32
    %c0_i32_0 = arith.constant 0 : i32
    %c0_i32_1 = arith.constant 0 : i32
    return %arg1, %c0_i32, %c0_i32_0 : i32, i32, i32
  }
  func.func @transform_2(%arg0: i32, %arg1: i32) -> (i32, i32, i32) {
    %c0_i32 = arith.constant 0 : i32
    %c0_i32_0 = arith.constant 0 : i32
    %c0_i32_1 = arith.constant 0 : i32
    return %arg1, %c0_i32, %c0_i32_0 : i32, i32, i32
  }
  func.func @transform_3(%arg0: i32, %arg1: i32) -> (i32, i32, i32) {
    %c0_i32 = arith.constant 0 : i32
    %c0_i32_0 = arith.constant 0 : i32
    %c0_i32_1 = arith.constant 0 : i32
    return %arg1, %c0_i32, %c0_i32_0 : i32, i32, i32
  }
  func.func @transform_4(%arg0: i32, %arg1: i32) -> (i32, i32, i32) {
    %c0_i32 = arith.constant 0 : i32
    %c0_i32_0 = arith.constant 0 : i32
    %c0_i32_1 = arith.constant 0 : i32
    return %arg1, %c0_i32, %c0_i32_0 : i32, i32, i32
  }
  func.func @transform_5(%arg0: i32, %arg1: i32) -> (i32, i32, i32) {
    %c0_i32 = arith.constant 0 : i32
    %c0_i32_0 = arith.constant 0 : i32
    %c0_i32_1 = arith.constant 0 : i32
    return %arg1, %c0_i32, %c0_i32_0 : i32, i32, i32
  }
  func.func @transform_6(%arg0: i32, %arg1: i32) -> (i32, i32, i32) {
    %c0_i32 = arith.constant 0 : i32
    %c0_i32_0 = arith.constant 0 : i32
    %c0_i32_1 = arith.constant 0 : i32
    return %arg1, %c0_i32, %c0_i32_0 : i32, i32, i32
  }
  func.func @transform_7(%arg0: i32, %arg1: i32) -> (i32, i32, i32) {
    %c0_i32 = arith.constant 0 : i32
    %c0_i32_0 = arith.constant 0 : i32
    %c0_i32_1 = arith.constant 0 : i32
    return %arg1, %c0_i32, %c0_i32_0 : i32, i32, i32
  }
  func.func @transform_8(%arg0: i32, %arg1: i32) -> (i32, i32) {
    %c0_i32 = arith.constant 0 : i32
    %c0_i32_0 = arith.constant 0 : i32
    %c0_i32_1 = arith.constant 0 : i32
    return %c0_i32, %c0_i32_0 : i32, i32
  }
  func.func @transform_9(%arg0: i32, %arg1: i32) -> (i32, i32, i32, i32) {
    %c0_i32 = arith.constant 0 : i32
    %c0_i32_0 = arith.constant 0 : i32
    %c0_i32_1 = arith.constant 0 : i32
    %c0_i32_2 = arith.constant 0 : i32
    return %c0_i32, %arg1, %c0_i32_0, %c0_i32_1 : i32, i32, i32, i32
  }
  func.func @transform_10(%arg0: i32, %arg1: i32) -> (i32, i32, i32, i32) {
    %c0_i32 = arith.constant 0 : i32
    %c0_i32_0 = arith.constant 0 : i32
    %c0_i32_1 = arith.constant 0 : i32
    %c0_i32_2 = arith.constant 0 : i32
    return %arg0, %c0_i32, %c0_i32_0, %c0_i32_1 : i32, i32, i32, i32
  }
  func.func @transform_11(%arg0: i32, %arg1: i32) -> (i32, i32, i32) {
    %c0_i32 = arith.constant 0 : i32
    %c0_i32_0 = arith.constant 0 : i32
    %c0_i32_1 = arith.constant 0 : i32
    return %arg0, %c0_i32, %c0_i32_0 : i32, i32, i32
  }
}

</mosaic_0001>

<llo_original>
// kernel: tpu_custom_call.1
$region0: #{tpu_custom_call.1}
  #allocation0 [shape = 'u32[]', space=smem, size = 0x4, offset = 0x4, fixed_abs, tag = 'smem constant byte address 0x4 - core index']
  #allocation1 [shape = 'u32[144,128]{1,0:T(1,128)}', space=vmem, size = 0x12000, scoped, tag = 'internal scratch']
  #allocation2 [shape = 'f32[8,32]{1,0:T(8,128)}', space=vmem, size = 0x1000, scoped, tag = 'scratch operand']
  %s0 = inlined_call_operand.vmem [shape: f32[2,8,32], index: 0, kind: input, shape index: {}]
  %s1 = inlined_call_operand.vmem [shape: f32[4,32,8], index: 1, kind: input, shape index: {}]
  %s2 = inlined_call_operand.vmem [shape: f32[4,1,8], index: 2, kind: input, shape index: {}]
  %s3 = inlined_call_operand.vmem [shape: f32[4,32,8], index: 3, kind: input, shape index: {}]
  %s4 = inlined_call_operand.vmem [shape: f32[4,1,8], index: 4, kind: input, shape index: {}]
  %s5 = inlined_call_operand.vmem [shape: f32[4,32,8], index: 5, kind: input, shape index: {}]
  %s6 = inlined_call_operand.vmem [shape: f32[4,1,8], index: 6, kind: input, shape index: {}]
  %s7 = inlined_call_operand.vmem [shape: f32[4,8,32], index: 7, kind: input, shape index: {}]
  %s8 = inlined_call_operand.vmem [shape: f32[1,32], index: 8, kind: input, shape index: {}]
  %s9 = inlined_call_operand.vmem [shape: f32[1,4,8,8], index: 9, kind: input, shape index: {}]
  %s10 = inlined_call_operand.vmem [shape: f32[2,1,8,8], index: 10, kind: input, shape index: {}]
  %s11 = inlined_call_operand.hbm [shape: f32[2,8,32], index: 11, kind: output, shape index: {}]
  %s12 = sld [smem:[#allocation0]]
  $region85: #{tpu_custom_call.1} parent=0
    _
  %s14 = ssub.s32 1, %s12
  %s15 = scalar_select 0, %s14, %s12
  $region1: #{tpu_custom_call.1} parent=0
    #allocation3 [shape = 'u8[8192]{0}', space=vmem, size = 0x2000, scoped, tag = 'output window, operand 0']
    #allocation4 [shape = 's32[2]{0}', space=sflag, size = 0x8, scoped, tag = 'scoped memory for tpu_custom_call.1']
    %16 = vsyncpa [#allocation4], 0
    %s17 = scalar_lea.sflag [#allocation4], 1
    %18 = vsyncpa %s17, 0
    loop: start=0, step=1, limit=10
    $region2: #{tpu_custom_call.1} parent=1 // loop_pre_header
      _
    $region3: #{tpu_custom_call.1} parent=1 // loop_header
      %s20 = sphi 0, %s24
      %p21 = scmp.ge.s32.totalorder %s20, 10
      %s27 = sphi 0, %s39
      %s28 = sphi 0, %s35
      %s29 = sphi 0, %s27
      %s30 = sphi 0, %s28
      %s31 = sphi 0, %s29
      %s32 = sphi 0, %s30
      %s42 = sphi 0, %s44
      %s45 = sphi 0, %s42
      %s46 = sphi 0, %s45
      %s62 = sphi 0, %s46
      %s68 = sphi 0, %s70
      %s71 = sphi 0, %s68
      %s72 = sphi 0, %s71
      %s88 = sphi 0, %s72
      %s94 = sphi 0, %s96
      %s97 = sphi 0, %s94
      %s98 = sphi 0, %s97
      %s114 = sphi 0, %s98
      %s120 = sphi 0, %s122
      %s123 = sphi 0, %s120
      %s124 = sphi 0, %s123
      %s140 = sphi 0, %s124
      %s146 = sphi 0, %s148
      %s149 = sphi 0, %s146
      %s150 = sphi 0, %s149
      %s166 = sphi 0, %s150
      %s172 = sphi 0, %s174
      %s175 = sphi 0, %s172
      %s176 = sphi 0, %s175
      %s192 = sphi 0, %s176
      %s198 = sphi 0, %s200
      %s201 = sphi 0, %s198
      %s202 = sphi 0, %s201
      %s218 = sphi 0, %s202
      %s224 = sphi 0, %s226
      %s227 = sphi 0, %s224
      %s228 = sphi 0, %s227
      %s244 = sphi 0, %s228
      %s248 = sphi 0, %s248
      %s250 = sphi 0, %s248
      %s251 = sphi 0, %s250
      %s265 = sphi 0, %s251
      %s271 = sphi 0, %s273
      %s274 = sphi 0, %s271
      %s275 = sphi 0, %s274
      %s291 = sphi 0, %s275
      %s297 = sphi 0, %s299
      %s300 = sphi 0, %s297
      %s301 = sphi 0, %s300
      %s317 = sphi 0, %s301
      %s323 = sphi 0, %s325
      %s326 = sphi 0, %s323
      %s327 = sphi 0, %s326
      %s343 = sphi 0, %s327
    $region4: #{tpu_custom_call.1} parent=1 // loop_header_branch
      %23 = sbr.rel (%p21) target = $region8
    $region5: #{tpu_custom_call.1} parent=1 // loop_body
      %s25 = ssub.s32 %s20, 1
      %s26 = ssub.s32 %s20, 2
      %s33 = sadd.s32 1, %s28
      %p34 = scmp.ge.s32.totalorder %s33, 4
      %s35 = scalar_select %p34, 0, %s33
      %s36 = sadd.s32 1, %s27
      %s37 = scalar_select %p34, %s36, %s27
      %p38 = scmp.ge.s32.totalorder %s37, 2
      %s39 = scalar_select %p38, 0, %s37
      %s40 = ssub.s32 %s27, %s39
      %p41 = scmp.eq.s32.totalorder %s40, 0
      %s43 = sadd.s32 %s42, 1
      %s44 = scalar_select %p41, %s42, %s43
      %p47 = pneg %p41
      %p48 = scmp.eq.s32.totalorder %s20, 7
      %p49 = por %p47, %p48
      %p50 = scmp.ne.s32.totalorder %s42, %s45
      %p51 = scmp.eq.s32.totalorder %s20, 0
      %p52 = por %p50, %p51
      %p53 = scmp.ne.s32.totalorder %s42, %s45
      %p54 = scmp.eq.s32.totalorder %s25, 7
      %p55 = por %p53, %p54
      %p56 = scmp.ne.s32.totalorder %s45, %s46
      %p57 = scmp.eq.s32.totalorder %s25, 0
      %p58 = por %p56, %p57
      %p59 = scmp.ne.s32.totalorder %s45, %s46
      %p60 = scmp.eq.s32.totalorder %s26, 7
      %p61 = por %p59, %p60
      %p63 = scmp.ne.s32.totalorder %s46, %s62
      %p64 = scmp.eq.s32.totalorder %s26, 0
      %p65 = por %p63, %p64
      %s66 = ssub.s32 %s28, %s35
      %p67 = scmp.eq.s32.totalorder %s66, 0
      %s69 = sadd.s32 %s68, 1
      %s70 = scalar_select %p67, %s68, %s69
      %p73 = pneg %p67
      %p74 = scmp.eq.s32.totalorder %s20, 7
      %p75 = por %p73, %p74
      %p76 = scmp.ne.s32.totalorder %s68, %s71
      %p77 = scmp.eq.s32.totalorder %s20, 0
      %p78 = por %p76, %p77
      %p79 = scmp.ne.s32.totalorder %s68, %s71
      %p80 = scmp.eq.s32.totalorder %s25, 7
      %p81 = por %p79, %p80
      %p82 = scmp.ne.s32.totalorder %s71, %s72
      %p83 = scmp.eq.s32.totalorder %s25, 0
      %p84 = por %p82, %p83
      %p85 = scmp.ne.s32.totalorder %s71, %s72
      %p86 = scmp.eq.s32.totalorder %s26, 7
      %p87 = por %p85, %p86
      %p89 = scmp.ne.s32.totalorder %s72, %s88
      %p90 = scmp.eq.s32.totalorder %s26, 0
      %p91 = por %p89, %p90
      %s92 = ssub.s32 %s28, %s35
      %p93 = scmp.eq.s32.totalorder %s92, 0
      %s95 = sadd.s32 %s94, 1
      %s96 = scalar_select %p93, %s94, %s95
      %p99 = pneg %p93
      %p100 = scmp.eq.s32.totalorder %s20, 7
      %p101 = por %p99, %p100
      %p102 = scmp.ne.s32.totalorder %s94, %s97
      %p103 = scmp.eq.s32.totalorder %s20, 0
      %p104 = por %p102, %p103
      %p105 = scmp.ne.s32.totalorder %s94, %s97
      %p106 = scmp.eq.s32.totalorder %s25, 7
      %p107 = por %p105, %p106
      %p108 = scmp.ne.s32.totalorder %s97, %s98
      %p109 = scmp.eq.s32.totalorder %s25, 0
      %p110 = por %p108, %p109
      %p111 = scmp.ne.s32.totalorder %s97, %s98
      %p112 = scmp.eq.s32.totalorder %s26, 7
      %p113 = por %p111, %p112
      %p115 = scmp.ne.s32.totalorder %s98, %s114
      %p116 = scmp.eq.s32.totalorder %s26, 0
      %p117 = por %p115, %p116
      %s118 = ssub.s32 %s28, %s35
      %p119 = scmp.eq.s32.totalorder %s118, 0
      %s121 = sadd.s32 %s120, 1
      %s122 = scalar_select %p119, %s120, %s121
      %p125 = pneg %p119
      %p126 = scmp.eq.s32.totalorder %s20, 7
      %p127 = por %p125, %p126
      %p128 = scmp.ne.s32.totalorder %s120, %s123
      %p129 = scmp.eq.s32.totalorder %s20, 0
      %p130 = por %p128, %p129
      %p131 = scmp.ne.s32.totalorder %s120, %s123
      %p132 = scmp.eq.s32.totalorder %s25, 7
      %p133 = por %p131, %p132
      %p134 = scmp.ne.s32.totalorder %s123, %s124
      %p135 = scmp.eq.s32.totalorder %s25, 0
      %p136 = por %p134, %p135
      %p137 = scmp.ne.s32.totalorder %s123, %s124
      %p138 = scmp.eq.s32.totalorder %s26, 7
      %p139 = por %p137, %p138
      %p141 = scmp.ne.s32.totalorder %s124, %s140
      %p142 = scmp.eq.s32.totalorder %s26, 0
      %p143 = por %p141, %p142
      %s144 = ssub.s32 %s28, %s35
      %p145 = scmp.eq.s32.totalorder %s144, 0
      %s147 = sadd.s32 %s146, 1
      %s148 = scalar_select %p145, %s146, %s147
      %p151 = pneg %p145
      %p152 = scmp.eq.s32.totalorder %s20, 7
      %p153 = por %p151, %p152
      %p154 = scmp.ne.s32.totalorder %s146, %s149
      %p155 = scmp.eq.s32.totalorder %s20, 0
      %p156 = por %p154, %p155
      %p157 = scmp.ne.s32.totalorder %s146, %s149
      %p158 = scmp.eq.s32.totalorder %s25, 7
      %p159 = por %p157, %p158
      %p160 = scmp.ne.s32.totalorder %s149, %s150
      %p161 = scmp.eq.s32.totalorder %s25, 0
      %p162 = por %p160, %p161
      %p163 = scmp.ne.s32.totalorder %s149, %s150
      %p164 = scmp.eq.s32.totalorder %s26, 7
      %p165 = por %p163, %p164
      %p167 = scmp.ne.s32.totalorder %s150, %s166
      %p168 = scmp.eq.s32.totalorder %s26, 0
      %p169 = por %p167, %p168
      %s170 = ssub.s32 %s28, %s35
      %p171 = scmp.eq.s32.totalorder %s170, 0
      %s173 = sadd.s32 %s172, 1
      %s174 = scalar_select %p171, %s172, %s173
      %p177 = pneg %p171
      %p178 = scmp.eq.s32.totalorder %s20, 7
      %p179 = por %p177, %p178
      %p180 = scmp.ne.s32.totalorder %s172, %s175
      %p181 = scmp.eq.s32.totalorder %s20, 0
      %p182 = por %p180, %p181
      %p183 = scmp.ne.s32.totalorder %s172, %s175
      %p184 = scmp.eq.s32.totalorder %s25, 7
      %p185 = por %p183, %p184
      %p186 = scmp.ne.s32.totalorder %s175, %s176
      %p187 = scmp.eq.s32.totalorder %s25, 0
      %p188 = por %p186, %p187
      %p189 = scmp.ne.s32.totalorder %s175, %s176
      %p190 = scmp.eq.s32.totalorder %s26, 7
      %p191 = por %p189, %p190
      %p193 = scmp.ne.s32.totalorder %s176, %s192
      %p194 = scmp.eq.s32.totalorder %s26, 0
      %p195 = por %p193, %p194
      %s196 = ssub.s32 %s28, %s35
      %p197 = scmp.eq.s32.totalorder %s196, 0
      %s199 = sadd.s32 %s198, 1
      %s200 = scalar_select %p197, %s198, %s199
      %p203 = pneg %p197
      %p204 = scmp.eq.s32.totalorder %s20, 7
      %p205 = por %p203, %p204
      %p206 = scmp.ne.s32.totalorder %s198, %s201
      %p207 = scmp.eq.s32.totalorder %s20, 0
      %p208 = por %p206, %p207
      %p209 = scmp.ne.s32.totalorder %s198, %s201
      %p210 = scmp.eq.s32.totalorder %s25, 7
      %p211 = por %p209, %p210
      %p212 = scmp.ne.s32.totalorder %s201, %s202
      %p213 = scmp.eq.s32.totalorder %s25, 0
      %p214 = por %p212, %p213
      %p215 = scmp.ne.s32.totalorder %s201, %s202
      %p216 = scmp.eq.s32.totalorder %s26, 7
      %p217 = por %p215, %p216
      %p219 = scmp.ne.s32.totalorder %s202, %s218
      %p220 = scmp.eq.s32.totalorder %s26, 0
      %p221 = por %p219, %p220
      %s222 = ssub.s32 %s28, %s35
      %p223 = scmp.eq.s32.totalorder %s222, 0
      %s225 = sadd.s32 %s224, 1
      %s226 = scalar_select %p223, %s224, %s225
      %p229 = pneg %p223
      %p230 = scmp.eq.s32.totalorder %s20, 7
      %p231 = por %p229, %p230
      %p232 = scmp.ne.s32.totalorder %s224, %s227
      %p233 = scmp.eq.s32.totalorder %s20, 0
      %p234 = por %p232, %p233
      %p235 = scmp.ne.s32.totalorder %s224, %s227
      %p236 = scmp.eq.s32.totalorder %s25, 7
      %p237 = por %p235, %p236
      %p238 = scmp.ne.s32.totalorder %s227, %s228
      %p239 = scmp.eq.s32.totalorder %s25, 0
      %p240 = por %p238, %p239
      %p241 = scmp.ne.s32.totalorder %s227, %s228
      %p242 = scmp.eq.s32.totalorder %s26, 7
      %p243 = por %p241, %p242
      %p245 = scmp.ne.s32.totalorder %s228, %s244
      %p246 = scmp.eq.s32.totalorder %s26, 0
      %p247 = por %p245, %p246
      %s249 = sadd.s32 %s248, 1
      %p252 = scmp.eq.s32.totalorder %s20, 7
      %p253 = scmp.ne.s32.totalorder %s248, %s250
      %p254 = scmp.eq.s32.totalorder %s20, 0
      %p255 = por %p253, %p254
      %p256 = scmp.ne.s32.totalorder %s248, %s250
      %p257 = scmp.eq.s32.totalorder %s25, 7
      %p258 = por %p256, %p257
      %p259 = scmp.ne.s32.totalorder %s250, %s251
      %p260 = scmp.eq.s32.totalorder %s25, 0
      %p261 = por %p259, %p260
      %p262 = scmp.ne.s32.totalorder %s250, %s251
      %p263 = scmp.eq.s32.totalorder %s26, 7
      %p264 = por %p262, %p263
      %p266 = scmp.ne.s32.totalorder %s251, %s265
      %p267 = scmp.eq.s32.totalorder %s26, 0
      %p268 = por %p266, %p267
      %s269 = ssub.s32 %s28, %s35
      %p270 = scmp.eq.s32.totalorder %s269, 0
      %s272 = sadd.s32 %s271, 1
      %s273 = scalar_select %p270, %s271, %s272
      %p276 = pneg %p270
      %p277 = scmp.eq.s32.totalorder %s20, 7
      %p278 = por %p276, %p277
      %p279 = scmp.ne.s32.totalorder %s271, %s274
      %p280 = scmp.eq.s32.totalorder %s20, 0
      %p281 = por %p279, %p280
      %p282 = scmp.ne.s32.totalorder %s271, %s274
      %p283 = scmp.eq.s32.totalorder %s25, 7
      %p284 = por %p282, %p283
      %p285 = scmp.ne.s32.totalorder %s274, %s275
      %p286 = scmp.eq.s32.totalorder %s25, 0
      %p287 = por %p285, %p286
      %p288 = scmp.ne.s32.totalorder %s274, %s275
      %p289 = scmp.eq.s32.totalorder %s26, 7
      %p290 = por %p288, %p289
      %p292 = scmp.ne.s32.totalorder %s275, %s291
      %p293 = scmp.eq.s32.totalorder %s26, 0
      %p294 = por %p292, %p293
      %s295 = ssub.s32 %s27, %s39
      %p296 = scmp.eq.s32.totalorder %s295, 0
      %s298 = sadd.s32 %s297, 1
      %s299 = scalar_select %p296, %s297, %s298
      %p302 = pneg %p296
      %p303 = scmp.eq.s32.totalorder %s20, 7
      %p304 = por %p302, %p303
      %p305 = scmp.ne.s32.totalorder %s297, %s300
      %p306 = scmp.eq.s32.totalorder %s20, 0
      %p307 = por %p305, %p306
      %p308 = scmp.ne.s32.totalorder %s297, %s300
      %p309 = scmp.eq.s32.totalorder %s25, 7
      %p310 = por %p308, %p309
      %p311 = scmp.ne.s32.totalorder %s300, %s301
      %p312 = scmp.eq.s32.totalorder %s25, 0
      %p313 = por %p311, %p312
      %p314 = scmp.ne.s32.totalorder %s300, %s301
      %p315 = scmp.eq.s32.totalorder %s26, 7
      %p316 = por %p314, %p315
      %p318 = scmp.ne.s32.totalorder %s301, %s317
      %p319 = scmp.eq.s32.totalorder %s26, 0
      %p320 = por %p318, %p319
      %s321 = ssub.s32 %s27, %s39
      %p322 = scmp.eq.s32.totalorder %s321, 0
      %s324 = sadd.s32 %s323, 1
      %s325 = scalar_select %p322, %s323, %s324
      %p328 = pneg %p322
      %p329 = scmp.eq.s32.totalorder %s20, 7
      %p330 = por %p328, %p329
      %p331 = scmp.ne.s32.totalorder %s323, %s326
      %p332 = scmp.eq.s32.totalorder %s20, 0
      %p333 = por %p331, %p332
      %p334 = scmp.ne.s32.totalorder %s323, %s326
      %p335 = scmp.eq.s32.totalorder %s25, 7
      %p336 = por %p334, %p335
      %p337 = scmp.ne.s32.totalorder %s326, %s327
      %p338 = scmp.eq.s32.totalorder %s25, 0
      %p339 = por %p337, %p338
      %p340 = scmp.ne.s32.totalorder %s326, %s327
      %p341 = scmp.eq.s32.totalorder %s26, 7
      %p342 = por %p340, %p341
      %p344 = scmp.ne.s32.totalorder %s327, %s343
      %p345 = scmp.eq.s32.totalorder %s26, 0
      %p346 = por %p344, %p345
      %p347 = scmp.le.s32.totalorder 1, %s20
      %p348 = scmp.lt.s32.totalorder %s20, 9
      %p349 = pnand %p347, %p348
      %p350 = pneg %p349
      // Predicated region
      $region9: #{tpu_custom_call.1} parent=5 // pred_check
        _
      $region10: #{tpu_custom_call.1} parent=5 // pred_check_branch
        %352 = sbr.rel (%p349) target = $region12
      $region11: #{tpu_custom_call.1} parent=5 // pred_region
        %s353 = ssub.s32 %s20, 1
        // Predicated region
        $region13: #{tpu_custom_call.1} parent=11 // pred_check
          %p354 = pneg %p261
        $region14: #{tpu_custom_call.1} parent=11 // pred_check_branch
          %356 = sbr.rel (%p354) target = $region16
        $region15: #{tpu_custom_call.1} parent=11 // pred_region
          _
        $region16: #{tpu_custom_call.1} parent=11 // pred_fallthru
          _
      $region12: #{tpu_custom_call.1} parent=5 // pred_fallthru
        _
      %p357 = scmp.lt.s32.totalorder %s20, 8
      // Predicated region
      $region17: #{tpu_custom_call.1} parent=5 // pred_check
        %p358 = pneg %p357
      $region18: #{tpu_custom_call.1} parent=5 // pred_check_branch
        %360 = sbr.rel (%p358) target = $region20
      $region19: #{tpu_custom_call.1} parent=5 // pred_region
        // Predicated region
        $region21: #{tpu_custom_call.1} parent=19 // pred_check
          %p361 = pneg %p52
        $region22: #{tpu_custom_call.1} parent=19 // pred_check_branch
          %363 = sbr.rel (%p361) target = $region24
        $region23: #{tpu_custom_call.1} parent=19 // pred_region
          %p364 = scmp.lt.s32.totalorder %s27, 1
          %s365 = scalar_select %p364, %s27, 1
          %s366 = smul.addr %s365, 8
          %s367 = scalar_lea.vmem %s0, %s366
        $region24: #{tpu_custom_call.1} parent=19 // pred_fallthru
          _
        // Predicated region
        $region25: #{tpu_custom_call.1} parent=19 // pred_check
          %p368 = pneg %p78
        $region26: #{tpu_custom_call.1} parent=19 // pred_check_branch
          %370 = sbr.rel (%p368) target = $region28
        $region27: #{tpu_custom_call.1} parent=19 // pred_region
          %p371 = scmp.lt.s32.totalorder %s28, 3
          %s372 = scalar_select %p371, %s28, 3
          %s373 = smul.addr %s372, 4
          %s374 = smul.addr %s373, 8
          %s375 = scalar_lea.vmem %s1, %s374
        $region28: #{tpu_custom_call.1} parent=19 // pred_fallthru
          _
        // Predicated region
        $region29: #{tpu_custom_call.1} parent=19 // pred_check
          %p376 = pneg %p104
        $region30: #{tpu_custom_call.1} parent=19 // pred_check_branch
          %378 = sbr.rel (%p376) target = $region32
        $region31: #{tpu_custom_call.1} parent=19 // pred_region
          %p379 = scmp.lt.s32.totalorder %s28, 3
          %s380 = scalar_select %p379, %s28, 3
          %s381 = scalar_lea.vmem %s2, %s380
        $region32: #{tpu_custom_call.1} parent=19 // pred_fallthru
          _
        // Predicated region
        $region33: #{tpu_custom_call.1} parent=19 // pred_check
          %p382 = pneg %p130
        $region34: #{tpu_custom_call.1} parent=19 // pred_check_branch
          %384 = sbr.rel (%p382) target = $region36
        $region35: #{tpu_custom_call.1} parent=19 // pred_region
          %p385 = scmp.lt.s32.totalorder %s28, 3
          %s386 = scalar_select %p385, %s28, 3
          %s387 = smul.addr %s386, 4
          %s388 = smul.addr %s387, 8
          %s389 = scalar_lea.vmem %s3, %s388
        $region36: #{tpu_custom_call.1} parent=19 // pred_fallthru
          _
        // Predicated region
        $region37: #{tpu_custom_call.1} parent=19 // pred_check
          %p390 = pneg %p156
        $region38: #{tpu_custom_call.1} parent=19 // pred_check_branch
          %392 = sbr.rel (%p390) target = $region40
        $region39: #{tpu_custom_call.1} parent=19 // pred_region
          %p393 = scmp.lt.s32.totalorder %s28, 3
          %s394 = scalar_select %p393, %s28, 3
          %s395 = scalar_lea.vmem %s4, %s394
        $region40: #{tpu_custom_call.1} parent=19 // pred_fallthru
          _
        // Predicated region
        $region41: #{tpu_custom_call.1} parent=19 // pred_check
          %p396 = pneg %p182
        $region42: #{tpu_custom_call.1} parent=19 // pred_check_branch
          %398 = sbr.rel (%p396) target = $region44
        $region43: #{tpu_custom_call.1} parent=19 // pred_region
          %p399 = scmp.lt.s32.totalorder %s28, 3
          %s400 = scalar_select %p399, %s28, 3
          %s401 = smul.addr %s400, 4
          %s402 = smul.addr %s401, 8
          %s403 = scalar_lea.vmem %s5, %s402
        $region44: #{tpu_custom_call.1} parent=19 // pred_fallthru
          _
        // Predicated region
        $region45: #{tpu_custom_call.1} parent=19 // pred_check
          %p404 = pneg %p208
        $region46: #{tpu_custom_call.1} parent=19 // pred_check_branch
          %406 = sbr.rel (%p404) target = $region48
        $region47: #{tpu_custom_call.1} parent=19 // pred_region
          %p407 = scmp.lt.s32.totalorder %s28, 3
          %s408 = scalar_select %p407, %s28, 3
          %s409 = scalar_lea.vmem %s6, %s408
        $region48: #{tpu_custom_call.1} parent=19 // pred_fallthru
          _
        // Predicated region
        $region49: #{tpu_custom_call.1} parent=19 // pred_check
          %p410 = pneg %p234
        $region50: #{tpu_custom_call.1} parent=19 // pred_check_branch
          %412 = sbr.rel (%p410) target = $region52
        $region51: #{tpu_custom_call.1} parent=19 // pred_region
          %p413 = scmp.lt.s32.totalorder %s28, 3
          %s414 = scalar_select %p413, %s28, 3
          %s415 = smul.addr %s414, 8
          %s416 = scalar_lea.vmem %s7, %s415
        $region52: #{tpu_custom_call.1} parent=19 // pred_fallthru
          _
        // Predicated region
        $region53: #{tpu_custom_call.1} parent=19 // pred_check
          %p417 = pneg %p281
        $region54: #{tpu_custom_call.1} parent=19 // pred_check_branch
          %419 = sbr.rel (%p417) target = $region56
        $region55: #{tpu_custom_call.1} parent=19 // pred_region
          %p420 = scmp.lt.s32.totalorder %s28, 3
          %s421 = scalar_select %p420, %s28, 3
          %s422 = smul.addr %s421, 8
          %s423 = scalar_lea.vmem %s9, %s422
        $region56: #{tpu_custom_call.1} parent=19 // pred_fallthru
          _
        // Predicated region
        $region57: #{tpu_custom_call.1} parent=19 // pred_check
          %p424 = pneg %p307
        $region58: #{tpu_custom_call.1} parent=19 // pred_check_branch
          %426 = sbr.rel (%p424) target = $region60
        $region59: #{tpu_custom_call.1} parent=19 // pred_region
          %p427 = scmp.lt.s32.totalorder %s27, 1
          %s428 = scalar_select %p427, %s27, 1
          %s429 = smul.addr %s428, 8
          %s430 = scalar_lea.vmem %s10, %s429
        $region60: #{tpu_custom_call.1} parent=19 // pred_fallthru
          _
      $region20: #{tpu_custom_call.1} parent=5 // pred_fallthru
        _
      %p431 = scmp.le.s32.totalorder 1, %s20
      %p432 = scmp.lt.s32.totalorder %s20, 9
      %p433 = pnand %p431, %p432
      %p434 = pneg %p433
      // Predicated region
      $region61: #{tpu_custom_call.1} parent=5 // pred_check
        _
      $region62: #{tpu_custom_call.1} parent=5 // pred_check_branch
        %436 = sbr.rel (%p433) target = $region64
      $region63: #{tpu_custom_call.1} parent=5 // pred_region
        %s437 = ssub.s32 %s20, 1
        %p438 = scmp.lt.s32.totalorder %s29, 1
        %s439 = scalar_select %p438, %s29, 1
        %s440 = smul.addr %s439, 8
        %s441 = scalar_lea.vmem %s0, %s440
        %p442 = pneg %p58
        %p443 = pneg %p55
        %p444 = scmp.lt.s32.totalorder %s30, 3
        %s445 = scalar_select %p444, %s30, 3
        %s446 = smul.addr %s445, 4
        %s447 = smul.addr %s446, 8
        %s448 = scalar_lea.vmem %s1, %s447
        %p449 = pneg %p84
        %p450 = pneg %p81
        %p451 = scmp.lt.s32.totalorder %s30, 3
        %s452 = scalar_select %p451, %s30, 3
        %s453 = scalar_lea.vmem %s2, %s452
        %p454 = pneg %p110
        %p455 = pneg %p107
        %p456 = scmp.lt.s32.totalorder %s30, 3
        %s457 = scalar_select %p456, %s30, 3
        %s458 = smul.addr %s457, 4
        %s459 = smul.addr %s458, 8
        %s460 = scalar_lea.vmem %s3, %s459
        %p461 = pneg %p136
        %p462 = pneg %p133
        %p463 = scmp.lt.s32.totalorder %s30, 3
        %s464 = scalar_select %p463, %s30, 3
        %s465 = scalar_lea.vmem %s4, %s464
        %p466 = pneg %p162
        %p467 = pneg %p159
        %p468 = scmp.lt.s32.totalorder %s30, 3
        %s469 = scalar_select %p468, %s30, 3
        %s470 = smul.addr %s469, 4
        %s471 = smul.addr %s470, 8
        %s472 = scalar_lea.vmem %s5, %s471
        %p473 = pneg %p188
        %p474 = pneg %p185
        %p475 = scmp.lt.s32.totalorder %s30, 3
        %s476 = scalar_select %p475, %s30, 3
        %s477 = scalar_lea.vmem %s6, %s476
        %p478 = pneg %p214
        %p479 = pneg %p211
        %p480 = scmp.lt.s32.totalorder %s30, 3
        %s481 = scalar_select %p480, %s30, 3
        %s482 = smul.addr %s481, 8
        %s483 = scalar_lea.vmem %s7, %s482
        %p484 = pneg %p240
        %p485 = pneg %p237
        %p486 = pneg %p261
        %p487 = pneg %p258
        %p488 = scmp.lt.s32.totalorder %s30, 3
        %s489 = scalar_select %p488, %s30, 3
        %s490 = smul.addr %s489, 8
        %s491 = scalar_lea.vmem %s9, %s490
        %p492 = pneg %p287
        %p493 = pneg %p284
        %p494 = scmp.lt.s32.totalorder %s29, 1
        %s495 = scalar_select %p494, %s29, 1
        %s496 = smul.addr %s495, 8
        %s497 = scalar_lea.vmem %s10, %s496
        %p498 = pneg %p313
        %p499 = pneg %p310
        %p500 = pneg %p339
        %p501 = pneg %p336
        %s502 = sand.u32 %s326, 1
        %s503 = scalar_lea.sflag [#allocation4], %s502
        %s504 = sand.u32 %s326, 1
        %s505 = smul.addr %s504, 8
        %s506 = scalar_lea.vmem [#allocation3], %s505
        %p507 = scmp.lt.s32.totalorder %s29, 1
        %s508 = scalar_select %p507, %s29, 1
        %s509 = smul.addr %s508, 8
        %s510 = scalar_lea.vmem %s0, %s509
        %p511 = scmp.lt.s32.totalorder %s30, 3
        %s512 = scalar_select %p511, %s30, 3
        %s513 = smul.addr %s512, 4
        %s514 = smul.addr %s513, 8
        %s515 = scalar_lea.vmem %s1, %s514
        %p516 = scmp.lt.s32.totalorder %s30, 3
        %s517 = scalar_select %p516, %s30, 3
        %s518 = scalar_lea.vmem %s2, %s517
        %p519 = scmp.lt.s32.totalorder %s30, 3
        %s520 = scalar_select %p519, %s30, 3
        %s521 = smul.addr %s520, 4
        %s522 = smul.addr %s521, 8
        %s523 = scalar_lea.vmem %s3, %s522
        %p524 = scmp.lt.s32.totalorder %s30, 3
        %s525 = scalar_select %p524, %s30, 3
        %s526 = scalar_lea.vmem %s4, %s525
        %p527 = scmp.lt.s32.totalorder %s30, 3
        %s528 = scalar_select %p527, %s30, 3
        %s529 = smul.addr %s528, 4
        %s530 = smul.addr %s529, 8
        %s531 = scalar_lea.vmem %s5, %s530
        %p532 = scmp.lt.s32.totalorder %s30, 3
        %s533 = scalar_select %p532, %s30, 3
        %s534 = scalar_lea.vmem %s6, %s533
        %p535 = scmp.lt.s32.totalorder %s30, 3
        %s536 = scalar_select %p535, %s30, 3
        %s537 = smul.addr %s536, 8
        %s538 = scalar_lea.vmem %s7, %s537
        %p539 = scmp.lt.s32.totalorder %s30, 3
        %s540 = scalar_select %p539, %s30, 3
        %s541 = smul.addr %s540, 8
        %s542 = scalar_lea.vmem %s9, %s541
        %p543 = scmp.lt.s32.totalorder %s29, 1
        %s544 = scalar_select %p543, %s29, 1
        %s545 = smul.addr %s544, 8
        %s546 = scalar_lea.vmem %s10, %s545
        %v547 = vld [vmem:[%s510] sm:$0xff]
        %v548 = vld [vmem:[%s515] sm:$0xff]
        %v549 = vld [vmem:[%s515 + $0x8] sm:$0xff]
        %v550 = vld [vmem:[%s515 + $0x10] sm:$0xff]
        %v551 = vld [vmem:[%s515 + $0x18] sm:$0xff]
        %v552 = vld [vmem:[%s518] sm:$0x1]
        %v554 = vlaneseq
        %v555 = vshrl.u32 %v554, 7
        %v556 = vsub.s32 0, %v555
        %v557 = vrot.slane %v552, %v556
        %vm559 = vcmask 261120
        %v561 = vsel %vm559, %v547, 0
        %563 = vmatprep.subr.mxu0 0.0
        %564 = vmatpush1.msra.mxu0 0.0
        %565 = vmatprep.subr.mxu0 0.0
        %566 = vmatpush1.msra.mxu0 0.0
        %567 = vmatprep.subr.mxu0 0.0
        %568 = vmatpush1.msra.mxu0 0.0
        %569 = vmatprep.subr.mxu0 0.0
        %570 = vmatpush1.msra.mxu0 0.0
        %571 = vmatprep.subr.mxu0 0.0
        %572 = vmatpush1.msra.mxu0 0.0
        %573 = vmatprep.subr.mxu0 0.0
        %574 = vmatpush1.msra.mxu0 0.0
        %575 = vmatprep.subr.mxu0 0.0
        %576 = vmatpush1.msra.mxu0 0.0
        %577 = vmatprep.subr.mxu0 0.0
        %578 = vmatpush1.msra.mxu0 0.0
        %579 = vmatprep.subr.mxu0 0.0
        %580 = vmatpush1.msra.mxu0 0.0
        %581 = vmatprep.subr.mxu0 0.0
        %582 = vmatpush1.msra.mxu0 0.0
        %583 = vmatprep.subr.mxu0 0.0
        %584 = vmatpush1.msra.mxu0 0.0
        %585 = vmatprep.subr.mxu0 0.0
        %586 = vmatpush1.msra.mxu0 0.0
        %587 = vmatprep.subr.mxu0 0.0
        %588 = vmatpush1.msra.mxu0 %v551
        %589 = vmatprep.subr.mxu0 0.0
        %590 = vmatpush1.msra.mxu0 %v550
        %591 = vmatprep.subr.mxu0 0.0
        %592 = vmatpush1.msra.mxu0 %v549
        %593 = vmatprep.subr.mxu0 0.0
        %594 = vmatpush1.msra.mxu0 %v548
        %595 = vmatprep.subr.mxu0 0.0
        %596 = vmatpush2.msra.mxu0 0.0
        %597 = vmatprep.subr.mxu0 0.0
        %598 = vmatpush2.msra.mxu0 0.0
        %599 = vmatprep.subr.mxu0 0.0
        %600 = vmatpush2.msra.mxu0 0.0
        %601 = vmatprep.subr.mxu0 0.0
        %602 = vmatpush2.msra.mxu0 0.0
        %603 = vmatprep.subr.mxu0 0.0
        %604 = vmatpush2.msra.mxu0 0.0
        %605 = vmatprep.subr.mxu0 0.0
        %606 = vmatpush2.msra.mxu0 0.0
        %607 = vmatprep.subr.mxu0 0.0
        %608 = vmatpush2.msra.mxu0 0.0
        %609 = vmatprep.subr.mxu0 0.0
        %610 = vmatpush2.msra.mxu0 0.0
        %611 = vmatprep.subr.mxu0 0.0
        %612 = vmatpush2.msra.mxu0 0.0
        %613 = vmatprep.subr.mxu0 0.0
        %614 = vmatpush2.msra.mxu0 0.0
        %615 = vmatprep.subr.mxu0 0.0
        %616 = vmatpush2.msra.mxu0 0.0
        %617 = vmatprep.subr.mxu0 0.0
        %618 = vmatpush2.msra.mxu0 0.0
        %619 = vmatprep.subr.mxu0 0.0
        %620 = vmatpush2.msra.mxu0 0.0
        %621 = vmatprep.subr.mxu0 0.0
        %622 = vmatpush2.msra.mxu0 0.0
        %623 = vmatprep.subr.mxu0 0.0
        %624 = vmatpush2.msra.mxu0 0.0
        %625 = vmatprep.subr.mxu0 0.0
        %626 = vmatpush2.msra.mxu0 0.0
        %627 = vmatprep.mubr.f32.mxu0 0.0
        %628 = vmatmul.mubr.f32.gmra.mxu0 %v561
        %v629 = vpop.f32.mrf.mxu0
        %v630 = vadd.f32 %v557, %v629
        %v631 = vpop.f32.mrf.mxu0
        %632 = vdwg.mxu0
        %v633 = vld [vmem:[%s523] sm:$0xff]
        %v634 = vld [vmem:[%s523 + $0x8] sm:$0xff]
        %v635 = vld [vmem:[%s523 + $0x10] sm:$0xff]
        %v636 = vld [vmem:[%s523 + $0x18] sm:$0xff]
        %v637 = vld [vmem:[%s526] sm:$0x1]
        %v639 = vlaneseq
        %v640 = vshrl.u32 %v639, 7
        %v641 = vsub.s32 0, %v640
        %v642 = vrot.slane %v637, %v641
        %644 = vmatprep.subr.mxu0 0.0
        %645 = vmatpush1.msra.mxu0 0.0
        %646 = vmatprep.subr.mxu0 0.0
        %647 = vmatpush1.msra.mxu0 0.0
        %648 = vmatprep.subr.mxu0 0.0
        %649 = vmatpush1.msra.mxu0 0.0
        %650 = vmatprep.subr.mxu0 0.0
        %651 = vmatpush1.msra.mxu0 0.0
        %652 = vmatprep.subr.mxu0 0.0
        %653 = vmatpush1.msra.mxu0 0.0
        %654 = vmatprep.subr.mxu0 0.0
        %655 = vmatpush1.msra.mxu0 0.0
        %656 = vmatprep.subr.mxu0 0.0
        %657 = vmatpush1.msra.mxu0 0.0
        %658 = vmatprep.subr.mxu0 0.0
        %659 = vmatpush1.msra.mxu0 0.0
        %660 = vmatprep.subr.mxu0 0.0
        %661 = vmatpush1.msra.mxu0 0.0
        %662 = vmatprep.subr.mxu0 0.0
        %663 = vmatpush1.msra.mxu0 0.0
        %664 = vmatprep.subr.mxu0 0.0
        %665 = vmatpush1.msra.mxu0 0.0
        %666 = vmatprep.subr.mxu0 0.0
        %667 = vmatpush1.msra.mxu0 0.0
        %668 = vmatprep.subr.mxu0 0.0
        %669 = vmatpush1.msra.mxu0 %v636
        %670 = vmatprep.subr.mxu0 0.0
        %671 = vmatpush1.msra.mxu0 %v635
        %672 = vmatprep.subr.mxu0 0.0
        %673 = vmatpush1.msra.mxu0 %v634
        %674 = vmatprep.subr.mxu0 0.0
        %675 = vmatpush1.msra.mxu0 %v633
        %676 = vmatprep.subr.mxu0 0.0
        %677 = vmatpush2.msra.mxu0 0.0
        %678 = vmatprep.subr.mxu0 0.0
        %679 = vmatpush2.msra.mxu0 0.0
        %680 = vmatprep.subr.mxu0 0.0
        %681 = vmatpush2.msra.mxu0 0.0
        %682 = vmatprep.subr.mxu0 0.0
        %683 = vmatpush2.msra.mxu0 0.0
        %684 = vmatprep.subr.mxu0 0.0
        %685 = vmatpush2.msra.mxu0 0.0
        %686 = vmatprep.subr.mxu0 0.0
        %687 = vmatpush2.msra.mxu0 0.0
        %688 = vmatprep.subr.mxu0 0.0
        %689 = vmatpush2.msra.mxu0 0.0
        %690 = vmatprep.subr.mxu0 0.0
        %691 = vmatpush2.msra.mxu0 0.0
        %692 = vmatprep.subr.mxu0 0.0
        %693 = vmatpush2.msra.mxu0 0.0
        %694 = vmatprep.subr.mxu0 0.0
        %695 = vmatpush2.msra.mxu0 0.0
        %696 = vmatprep.subr.mxu0 0.0
        %697 = vmatpush2.msra.mxu0 0.0
        %698 = vmatprep.subr.mxu0 0.0
        %699 = vmatpush2.msra.mxu0 0.0
        %700 = vmatprep.subr.mxu0 0.0
        %701 = vmatpush2.msra.mxu0 0.0
        %702 = vmatprep.subr.mxu0 0.0
        %703 = vmatpush2.msra.mxu0 0.0
        %704 = vmatprep.subr.mxu0 0.0
        %705 = vmatpush2.msra.mxu0 0.0
        %706 = vmatprep.subr.mxu0 0.0
        %707 = vmatpush2.msra.mxu0 0.0
        %708 = vmatprep.mubr.f32.mxu0 0.0
        %709 = vmatmul.mubr.f32.gmra.mxu0 %v561
        %v710 = vpop.f32.mrf.mxu0
        %v711 = vadd.f32 %v642, %v710
        %v712 = vpop.f32.mrf.mxu0
        %713 = vdwg.mxu0
        %v714 = vld [vmem:[%s531] sm:$0xff]
        %v715 = vld [vmem:[%s531 + $0x8] sm:$0xff]
        %v716 = vld [vmem:[%s531 + $0x10] sm:$0xff]
        %v717 = vld [vmem:[%s531 + $0x18] sm:$0xff]
        %v718 = vld [vmem:[%s534] sm:$0x1]
        %v720 = vlaneseq
        %v721 = vshrl.u32 %v720, 7
        %v722 = vsub.s32 0, %v721
        %v723 = vrot.slane %v718, %v722
        %725 = vmatprep.subr.mxu0 0.0
        %726 = vmatpush1.msra.mxu0 0.0
        %727 = vmatprep.subr.mxu0 0.0
        %728 = vmatpush1.msra.mxu0 0.0
        %729 = vmatprep.subr.mxu0 0.0
        %730 = vmatpush1.msra.mxu0 0.0
        %731 = vmatprep.subr.mxu0 0.0
        %732 = vmatpush1.msra.mxu0 0.0
        %733 = vmatprep.subr.mxu0 0.0
        %734 = vmatpush1.msra.mxu0 0.0
        %735 = vmatprep.subr.mxu0 0.0
        %736 = vmatpush1.msra.mxu0 0.0
        %737 = vmatprep.subr.mxu0 0.0
        %738 = vmatpush1.msra.mxu0 0.0
        %739 = vmatprep.subr.mxu0 0.0
        %740 = vmatpush1.msra.mxu0 0.0
        %741 = vmatprep.subr.mxu0 0.0
        %742 = vmatpush1.msra.mxu0 0.0
        %743 = vmatprep.subr.mxu0 0.0
        %744 = vmatpush1.msra.mxu0 0.0
        %745 = vmatprep.subr.mxu0 0.0
        %746 = vmatpush1.msra.mxu0 0.0
        %747 = vmatprep.subr.mxu0 0.0
        %748 = vmatpush1.msra.mxu0 0.0
        %749 = vmatprep.subr.mxu0 0.0
        %750 = vmatpush1.msra.mxu0 %v717
        %751 = vmatprep.subr.mxu0 0.0
        %752 = vmatpush1.msra.mxu0 %v716
        %753 = vmatprep.subr.mxu0 0.0
        %754 = vmatpush1.msra.mxu0 %v715
        %755 = vmatprep.subr.mxu0 0.0
        %756 = vmatpush1.msra.mxu0 %v714
        %757 = vmatprep.subr.mxu0 0.0
        %758 = vmatpush2.msra.mxu0 0.0
        %759 = vmatprep.subr.mxu0 0.0
        %760 = vmatpush2.msra.mxu0 0.0
        %761 = vmatprep.subr.mxu0 0.0
        %762 = vmatpush2.msra.mxu0 0.0
        %763 = vmatprep.subr.mxu0 0.0
        %764 = vmatpush2.msra.mxu0 0.0
        %765 = vmatprep.subr.mxu0 0.0
        %766 = vmatpush2.msra.mxu0 0.0
        %767 = vmatprep.subr.mxu0 0.0
        %768 = vmatpush2.msra.mxu0 0.0
        %769 = vmatprep.subr.mxu0 0.0
        %770 = vmatpush2.msra.mxu0 0.0
        %771 = vmatprep.subr.mxu0 0.0
        %772 = vmatpush2.msra.mxu0 0.0
        %773 = vmatprep.subr.mxu0 0.0
        %774 = vmatpush2.msra.mxu0 0.0
        %775 = vmatprep.subr.mxu0 0.0
        %776 = vmatpush2.msra.mxu0 0.0
        %777 = vmatprep.subr.mxu0 0.0
        %778 = vmatpush2.msra.mxu0 0.0
        %779 = vmatprep.subr.mxu0 0.0
        %780 = vmatpush2.msra.mxu0 0.0
        %781 = vmatprep.subr.mxu0 0.0
        %782 = vmatpush2.msra.mxu0 0.0
        %783 = vmatprep.subr.mxu0 0.0
        %784 = vmatpush2.msra.mxu0 0.0
        %785 = vmatprep.subr.mxu0 0.0
        %786 = vmatpush2.msra.mxu0 0.0
        %787 = vmatprep.subr.mxu0 0.0
        %788 = vmatpush2.msra.mxu0 0.0
        %789 = vmatprep.mubr.f32.mxu0 0.0
        %790 = vmatmul.mubr.f32.gmra.mxu0 %v561
        %v791 = vpop.f32.mrf.mxu0
        %v792 = vadd.f32 %v723, %v791
        %v793 = vpop.f32.mrf.mxu0
        %794 = vdwg.mxu0
        %v795 = vmul.f32 %v630, 0.015625
        %v796 = vld [vmem:[%s542] sm:$0xff]
        %vm797 = vcmask 64512
        %v799 = vsel %vm797, %v795, 0
        %v802 = vsel %vm797, %v711, 0
        %804 = vmatprep.subr.mxu0 0.0
        %805 = vmatpush1.xpose.msra.mxu0 0.0
        %806 = vmatprep.subr.mxu0 0.0
        %807 = vmatpush1.xpose.msra.mxu0 0.0
        %808 = vmatprep.subr.mxu0 0.0
        %809 = vmatpush1.xpose.msra.mxu0 0.0
        %810 = vmatprep.subr.mxu0 0.0
        %811 = vmatpush1.xpose.msra.mxu0 0.0
        %812 = vmatprep.subr.mxu0 0.0
        %813 = vmatpush1.xpose.msra.mxu0 0.0
        %814 = vmatprep.subr.mxu0 0.0
        %815 = vmatpush1.xpose.msra.mxu0 0.0
        %816 = vmatprep.subr.mxu0 0.0
        %817 = vmatpush1.xpose.msra.mxu0 0.0
        %818 = vmatprep.subr.mxu0 0.0
        %819 = vmatpush1.xpose.msra.mxu0 0.0
        %820 = vmatprep.subr.mxu0 0.0
        %821 = vmatpush1.xpose.msra.mxu0 0.0
        %822 = vmatprep.subr.mxu0 0.0
        %823 = vmatpush1.xpose.msra.mxu0 0.0
        %824 = vmatprep.subr.mxu0 0.0
        %825 = vmatpush1.xpose.msra.mxu0 0.0
        %826 = vmatprep.subr.mxu0 0.0
        %827 = vmatpush1.xpose.msra.mxu0 0.0
        %828 = vmatprep.subr.mxu0 0.0
        %829 = vmatpush1.xpose.msra.mxu0 0.0
        %830 = vmatprep.subr.mxu0 0.0
        %831 = vmatpush1.xpose.msra.mxu0 0.0
        %832 = vmatprep.subr.mxu0 0.0
        %833 = vmatpush1.xpose.msra.mxu0 0.0
        %834 = vmatprep.subr.mxu0 0.0
        %835 = vmatpush1.xpose.msra.mxu0 %v802
        %836 = vmatprep.subr.mxu0 0.0
        %837 = vmatpush2.xpose.msra.mxu0 0.0
        %838 = vmatprep.subr.mxu0 0.0
        %839 = vmatpush2.xpose.msra.mxu0 0.0
        %840 = vmatprep.subr.mxu0 0.0
        %841 = vmatpush2.xpose.msra.mxu0 0.0
        %842 = vmatprep.subr.mxu0 0.0
        %843 = vmatpush2.xpose.msra.mxu0 0.0
        %844 = vmatprep.subr.mxu0 0.0
        %845 = vmatpush2.xpose.msra.mxu0 0.0
        %846 = vmatprep.subr.mxu0 0.0
        %847 = vmatpush2.xpose.msra.mxu0 0.0
        %848 = vmatprep.subr.mxu0 0.0
        %849 = vmatpush2.xpose.msra.mxu0 0.0
        %850 = vmatprep.subr.mxu0 0.0
        %851 = vmatpush2.xpose.msra.mxu0 0.0
        %852 = vmatprep.subr.mxu0 0.0
        %853 = vmatpush2.xpose.msra.mxu0 0.0
        %854 = vmatprep.subr.mxu0 0.0
        %855 = vmatpush2.xpose.msra.mxu0 0.0
        %856 = vmatprep.subr.mxu0 0.0
        %857 = vmatpush2.xpose.msra.mxu0 0.0
        %858 = vmatprep.subr.mxu0 0.0
        %859 = vmatpush2.xpose.msra.mxu0 0.0
        %860 = vmatprep.subr.mxu0 0.0
        %861 = vmatpush2.xpose.msra.mxu0 0.0
        %862 = vmatprep.subr.mxu0 0.0
        %863 = vmatpush2.xpose.msra.mxu0 0.0
        %864 = vmatprep.subr.mxu0 0.0
        %865 = vmatpush2.xpose.msra.mxu0 0.0
        %866 = vmatprep.subr.mxu0 0.0
        %867 = vmatpush2.xpose.msra.mxu0 0.0
        %868 = vmatprep.mubr.f32.mxu0 0.0
        %869 = vmatmul.mubr.f32.gmra.mxu0 %v799
        %v870 = vpop.f32.mrf.mxu0
        %v871 = vadd.f32 %v796, %v870
        %v872 = vpop.f32.mrf.mxu0
        %873 = vdwg.mxu0
        %v874 = vld [vmem:[%s546] sm:$0xff]
        %v875 = vadd.f32 %v871, %v874
        %v876 = vsel %vm797, %v875, -inf
        %877 = vmax.xlane.f32.xlu0 %v876
        %v878 = vpop.xlane.xlu0 %877
        %v879 = vsub.f32 %v875, %v878
        %v880 = vmul.f32 %v879, 1.442695
        %v881 = vpow.pop %v880
        %v882 = vsel %vm797, %v881, 0.0
        %883 = vadd.xlane.f32.xlu0 %v882
        %v884 = vpop.xlane.xlu0 %883
        %v885 = vrcp.pop %v884
        %v886 = vmul.f32 %v881, %v885
        %v888 = vsel %vm797, %v886, 0
        %890 = vmatprep.subr.mxu0 0.0
        %891 = vmatpush1.msra.mxu0 0.0
        %892 = vmatprep.subr.mxu0 0.0
        %893 = vmatpush1.msra.mxu0 0.0
        %894 = vmatprep.subr.mxu0 0.0
        %895 = vmatpush1.msra.mxu0 0.0
        %896 = vmatprep.subr.mxu0 0.0
        %897 = vmatpush1.msra.mxu0 0.0
        %898 = vmatprep.subr.mxu0 0.0
        %899 = vmatpush1.msra.mxu0 0.0
        %900 = vmatprep.subr.mxu0 0.0
        %901 = vmatpush1.msra.mxu0 0.0
        %902 = vmatprep.subr.mxu0 0.0
        %903 = vmatpush1.msra.mxu0 0.0
        %904 = vmatprep.subr.mxu0 0.0
        %905 = vmatpush1.msra.mxu0 0.0
        %906 = vmatprep.subr.mxu0 0.0
        %907 = vmatpush1.msra.mxu0 0.0
        %908 = vmatprep.subr.mxu0 0.0
        %909 = vmatpush1.msra.mxu0 0.0
        %910 = vmatprep.subr.mxu0 0.0
        %911 = vmatpush1.msra.mxu0 0.0
        %912 = vmatprep.subr.mxu0 0.0
        %913 = vmatpush1.msra.mxu0 0.0
        %914 = vmatprep.subr.mxu0 0.0
        %915 = vmatpush1.msra.mxu0 0.0
        %916 = vmatprep.subr.mxu0 0.0
        %917 = vmatpush1.msra.mxu0 0.0
        %918 = vmatprep.subr.mxu0 0.0
        %919 = vmatpush1.msra.mxu0 0.0
        %920 = vmatprep.subr.mxu0 0.0
        %921 = vmatpush1.msra.mxu0 %v792
        %922 = vmatprep.subr.mxu0 0.0
        %923 = vmatpush2.msra.mxu0 0.0
        %924 = vmatprep.subr.mxu0 0.0
        %925 = vmatpush2.msra.mxu0 0.0
        %926 = vmatprep.subr.mxu0 0.0
        %927 = vmatpush2.msra.mxu0 0.0
        %928 = vmatprep.subr.mxu0 0.0
        %929 = vmatpush2.msra.mxu0 0.0
        %930 = vmatprep.subr.mxu0 0.0
        %931 = vmatpush2.msra.mxu0 0.0
        %932 = vmatprep.subr.mxu0 0.0
        %933 = vmatpush2.msra.mxu0 0.0
        %934 = vmatprep.subr.mxu0 0.0
        %935 = vmatpush2.msra.mxu0 0.0
        %936 = vmatprep.subr.mxu0 0.0
        %937 = vmatpush2.msra.mxu0 0.0
        %938 = vmatprep.subr.mxu0 0.0
        %939 = vmatpush2.msra.mxu0 0.0
        %940 = vmatprep.subr.mxu0 0.0
        %941 = vmatpush2.msra.mxu0 0.0
        %942 = vmatprep.subr.mxu0 0.0
        %943 = vmatpush2.msra.mxu0 0.0
        %944 = vmatprep.subr.mxu0 0.0
        %945 = vmatpush2.msra.mxu0 0.0
        %946 = vmatprep.subr.mxu0 0.0
        %947 = vmatpush2.msra.mxu0 0.0
        %948 = vmatprep.subr.mxu0 0.0
        %949 = vmatpush2.msra.mxu0 0.0
        %950 = vmatprep.subr.mxu0 0.0
        %951 = vmatpush2.msra.mxu0 0.0
        %952 = vmatprep.subr.mxu0 0.0
        %953 = vmatpush2.msra.mxu0 0.0
        %954 = vmatprep.mubr.f32.mxu0 0.0
        %955 = vmatmul.mubr.f32.gmra.mxu0 %v888
        %v956 = vpop.f32.mrf.mxu0
        %v957 = vadd.f32 0.0, %v956
        %v958 = vpop.f32.mrf.mxu0
        %959 = vdwg.mxu0
        %p960 = scmp.eq.s32.totalorder %s30, 0
        // Predicated region
        $region65: #{tpu_custom_call.1} parent=63 // pred_check
          %p961 = pneg %p960
        $region66: #{tpu_custom_call.1} parent=63 // pred_check_branch
          %963 = sbr.rel (%p961) target = $region68
        $region67: #{tpu_custom_call.1} parent=63 // pred_region
          %964 = vst.msk [vmem:[#allocation2] sm:$0xff] %vm559, 0.0
        $region68: #{tpu_custom_call.1} parent=63 // pred_fallthru
          _
        %v965 = vld [vmem:[#allocation2] sm:$0xff]
        %v966 = vld [vmem:[%s538] sm:$0xff]
        %v968 = vsel %vm797, %v957, 0
        %970 = vmatprep.subr.mxu0 0.0
        %971 = vmatpush1.msra.mxu0 0.0
        %972 = vmatprep.subr.mxu0 0.0
        %973 = vmatpush1.msra.mxu0 0.0
        %974 = vmatprep.subr.mxu0 0.0
        %975 = vmatpush1.msra.mxu0 0.0
        %976 = vmatprep.subr.mxu0 0.0
        %977 = vmatpush1.msra.mxu0 0.0
        %978 = vmatprep.subr.mxu0 0.0
        %979 = vmatpush1.msra.mxu0 0.0
        %980 = vmatprep.subr.mxu0 0.0
        %981 = vmatpush1.msra.mxu0 0.0
        %982 = vmatprep.subr.mxu0 0.0
        %983 = vmatpush1.msra.mxu0 0.0
        %984 = vmatprep.subr.mxu0 0.0
        %985 = vmatpush1.msra.mxu0 0.0
        %986 = vmatprep.subr.mxu0 0.0
        %987 = vmatpush1.msra.mxu0 0.0
        %988 = vmatprep.subr.mxu0 0.0
        %989 = vmatpush1.msra.mxu0 0.0
        %990 = vmatprep.subr.mxu0 0.0
        %991 = vmatpush1.msra.mxu0 0.0
        %992 = vmatprep.subr.mxu0 0.0
        %993 = vmatpush1.msra.mxu0 0.0
        %994 = vmatprep.subr.mxu0 0.0
        %995 = vmatpush1.msra.mxu0 0.0
        %996 = vmatprep.subr.mxu0 0.0
        %997 = vmatpush1.msra.mxu0 0.0
        %998 = vmatprep.subr.mxu0 0.0
        %999 = vmatpush1.msra.mxu0 0.0
        %1000 = vmatprep.subr.mxu0 0.0
        %1001 = vmatpush1.msra.mxu0 %v966
        %1002 = vmatprep.subr.mxu0 0.0
        %1003 = vmatpush2.msra.mxu0 0.0
        %1004 = vmatprep.subr.mxu0 0.0
        %1005 = vmatpush2.msra.mxu0 0.0
        %1006 = vmatprep.subr.mxu0 0.0
        %1007 = vmatpush2.msra.mxu0 0.0
        %1008 = vmatprep.subr.mxu0 0.0
        %1009 = vmatpush2.msra.mxu0 0.0
        %1010 = vmatprep.subr.mxu0 0.0
        %1011 = vmatpush2.msra.mxu0 0.0
        %1012 = vmatprep.subr.mxu0 0.0
        %1013 = vmatpush2.msra.mxu0 0.0
        %1014 = vmatprep.subr.mxu0 0.0
        %1015 = vmatpush2.msra.mxu0 0.0
        %1016 = vmatprep.subr.mxu0 0.0
        %1017 = vmatpush2.msra.mxu0 0.0
        %1018 = vmatprep.subr.mxu0 0.0
        %1019 = vmatpush2.msra.mxu0 0.0
        %1020 = vmatprep.subr.mxu0 0.0
        %1021 = vmatpush2.msra.mxu0 0.0
        %1022 = vmatprep.subr.mxu0 0.0
        %1023 = vmatpush2.msra.mxu0 0.0
        %1024 = vmatprep.subr.mxu0 0.0
        %1025 = vmatpush2.msra.mxu0 0.0
        %1026 = vmatprep.subr.mxu0 0.0
        %1027 = vmatpush2.msra.mxu0 0.0
        %1028 = vmatprep.subr.mxu0 0.0
        %1029 = vmatpush2.msra.mxu0 0.0
        %1030 = vmatprep.subr.mxu0 0.0
        %1031 = vmatpush2.msra.mxu0 0.0
        %1032 = vmatprep.subr.mxu0 0.0
        %1033 = vmatpush2.msra.mxu0 0.0
        %1034 = vmatprep.mubr.f32.mxu0 0.0
        %1035 = vmatmul.mubr.f32.gmra.mxu0 %v968
        %v1036 = vpop.f32.mrf.mxu0
        %v1037 = vadd.f32 0.0, %v1036
        %v1038 = vpop.f32.mrf.mxu0
        %1039 = vdwg.mxu0
        %v1040 = vadd.f32 %v965, %v1037
        %1041 = vst.msk [vmem:[#allocation2] sm:$0xff] %vm559, %v1040
        %p1042 = scmp.eq.s32.totalorder %s30, 3
        // Predicated region
        $region69: #{tpu_custom_call.1} parent=63 // pred_check
          %p1043 = pneg %p1042
        $region70: #{tpu_custom_call.1} parent=63 // pred_check_branch
          %1045 = sbr.rel (%p1043) target = $region72
        $region71: #{tpu_custom_call.1} parent=63 // pred_region
          %v1046 = vld [vmem:[#allocation2] sm:$0xff]
          %v1047 = vld [vmem:[%s8] sm:$0x1]
          %v1049 = vlaneseq
          %v1050 = vshrl.u32 %v1049, 7
          %v1051 = vsub.s32 0, %v1050
          %v1052 = vrot.slane %v1047, %v1051
          %v1054 = vadd.f32 %v1046, %v1052
          %1055 = vst.msk [vmem:[%s506] sm:$0xff] %vm559, %v1054
        $region72: #{tpu_custom_call.1} parent=63 // pred_fallthru
          _
        %s1056 = sand.u32 %s326, 1
        %s1057 = scalar_lea.sflag [#allocation4], %s1056
        %s1058 = sand.u32 %s326, 1
        %s1059 = smul.addr %s1058, 8
        %s1060 = scalar_lea.vmem [#allocation3], %s1059
        // Predicated region
        $region73: #{tpu_custom_call.1} parent=63 // pred_check
          %p1061 = pneg %p336
        $region74: #{tpu_custom_call.1} parent=63 // pred_check_branch
          %1063 = sbr.rel (%p1061) target = $region76
        $region75: #{tpu_custom_call.1} parent=63 // pred_region
          %s1065 = ssub.s32 128, 128
          %1066 = vsyncadd %s1057, %s1065
          %s1067 = smul.addr %s29, 128
          %s1068 = scalar_lea.hbm %s11, %s1067
          %s1070 = sshll.u32 %s1060, 4
          %s1071 = int_to_ptr.vmem [resolvable:$true] %s1070
          %1073 = dma.vmem_to_hbm [thread:$0]  %s1071, 128, %s1068, %s1057
        $region76: #{tpu_custom_call.1} parent=63 // pred_fallthru
          _
      $region64: #{tpu_custom_call.1} parent=5 // pred_fallthru
        _
      %p1074 = scmp.le.s32.totalorder 2, %s20
      // Predicated region
      $region77: #{tpu_custom_call.1} parent=5 // pred_check
        %p1075 = pneg %p1074
      $region78: #{tpu_custom_call.1} parent=5 // pred_check_branch
        %1077 = sbr.rel (%p1075) target = $region80
      $region79: #{tpu_custom_call.1} parent=5 // pred_region
        %s1078 = ssub.s32 %s20, 2
        // Predicated region
        $region81: #{tpu_custom_call.1} parent=79 // pred_check
          %p1079 = pneg %p342
        $region82: #{tpu_custom_call.1} parent=79 // pred_check_branch
          %1081 = sbr.rel (%p1079) target = $region84
        $region83: #{tpu_custom_call.1} parent=79 // pred_region
          %s1082 = sand.u32 %s327, 1
          %s1083 = scalar_lea.sflag [#allocation4], %s1082
          %s1084 = sand.u32 %s327, 1
          %s1085 = smul.addr %s1084, 8
          %s1086 = scalar_lea.vmem [#allocation3], %s1085
          %1087 = dma.done %s1083, 128
        $region84: #{tpu_custom_call.1} parent=79 // pred_fallthru
          _
      $region80: #{tpu_custom_call.1} parent=5 // pred_fallthru
        _
    $region6: #{tpu_custom_call.1} parent=1 // loop_footer
      %s24 = sadd.s32 1, %s20
    $region7: #{tpu_custom_call.1} parent=1 // loop_footer_branch
      %19 = sbr.rel target = $region3
    $region8: #{tpu_custom_call.1} parent=1 // loop_exit
      _
    %1088 = vsyncpa [#allocation4], 1
    %s1089 = scalar_lea.sflag [#allocation4], 1
    %1090 = vsyncpa %s1089, 1

</llo_original>
